<compile_context>
chip_gen: v6e
topology: v6e:2x2x1
jax: 0.10.0
libtpu: 0.0.40
codegen_flags: <defaults>
</compile_context>

<pallas_src>
import jax
import jax.numpy as jnp
from jax import lax
from jax.experimental import pallas as pl
from jax.experimental.pallas import tpu as pltpu


def policy_net_kernel(x_ref, w1_ref, bw_ref, b2_ref, o_ref):
    # First linear on the MXU: bf16 operands (x cast fused here), f32 accumulate.
    h = jnp.dot(x_ref[...].astype(jnp.bfloat16), w1_ref[...],
                preferred_element_type=jnp.float32)              # [TB, H] f32
    # Bias + ReLU in f32 on the VPU. bw_ref row 0 = b1, row 1 = w2.
    h = jnp.maximum(h + bw_ref[0:1, :], 0.0)                     # [TB, H]
    # Second linear (out_dim = 1) computed transposed so the result is
    # lane-dense: [1, H] contracted with [TB, H] over H -> [1, TB].
    y = lax.dot_general(bw_ref[1:2, :], h,
                        (((1,), (1,)), ((), ())),
                        preferred_element_type=jnp.float32)      # [1, TB]
    y = y + b2_ref[0, 0]                                         # scalar bias (SMEM)
    # Sigmoid: EUP exp + EUP approximate reciprocal on a lane-dense row.
    o_ref[...] = pl.reciprocal(1.0 + jnp.exp(-y), approx=True)


def policy_net_forward(x, w1, b1, w2, b2, *, tb=512):
    """x: [B, in_dim] f32; w1: [in_dim, hidden] f32; b1: [1, hidden] f32;
       w2: [1, hidden] f32 (row form of linear2 weight); b2: [1, 1] f32.
       Returns sigmoid(relu(x @ w1 + b1) @ w2.T + b2) as [B, 1] f32."""
    B, in_dim = x.shape
    hidden = w1.shape[1]

    # Batch tile: multiple of 128 (it is the lane width of the output row).
    # Cap near ceil(B/2) so the parallel grid gets >= 2 steps for B > 128
    # (megacore on v7x); no wrapper-side pad of x — ragged last tile is fine
    # and padded output lanes are discarded below.
    tb = max(128, (int(tb) // 128) * 128)
    tb_cap = max(128, int(pl.cdiv(pl.cdiv(B, 2), 128)) * 128)
    tb = int(min(tb, tb_cap))
    nblk = int(pl.cdiv(B, tb))
    Bp = nblk * tb

    # Tiny, reused weights: pre-cast W1 to bf16; pack b1 & w2 into one tile.
    w1_bf = w1.astype(jnp.bfloat16)                # [in, hidden] bf16
    bw = jnp.concatenate([b1, w2], axis=0)         # [2, hidden] f32

    flops = int(2 * Bp * in_dim * hidden + 2 * Bp * hidden)
    bytes_accessed = int(B * in_dim * 4 + w1_bf.size * 2
                         + bw.size * 4 + b2.size * 4 + Bp * 4)

    out = pl.pallas_call(
        policy_net_kernel,
        out_shape=jax.ShapeDtypeStruct((1, Bp), jnp.float32),
        grid=(nblk,),
        in_specs=[
            pl.BlockSpec((tb, in_dim), lambda i: (i, 0)),        # x tile (f32)
            pl.BlockSpec((in_dim, hidden), lambda i: (0, 0)),    # W1 bf16, resident
            pl.BlockSpec((2, hidden), lambda i: (0, 0)),         # [b1; w2], resident
            pl.BlockSpec(memory_space=pltpu.SMEM),               # b2 scalar in SMEM
        ],
        out_specs=pl.BlockSpec((1, tb), lambda i: (0, i)),       # lane-dense row
        compiler_params=pltpu.CompilerParams(
            dimension_semantics=("parallel",)),
        cost_estimate=pl.CostEstimate(
            flops=flops, transcendentals=2 * Bp, bytes_accessed=bytes_accessed),
    )(x, w1_bf, bw, b2)

    # Drop padded lanes (if any) and restore the [B, 1] column shape.
    return out[0, :B].reshape(B, 1)


def init_params(key, in_dim, hidden_size):
    """Deterministic synthetic parameters matching PolicyNet's shapes."""
    k1, k2, k3, k4 = jax.random.split(key, 4)
    # PyTorch linear1.weight is [hidden, in]; keep pre-transposed [in, hidden].
    w1 = jax.random.normal(k1, (in_dim, hidden_size), jnp.float32) * 0.05
    b1 = jax.random.normal(k2, (1, hidden_size), jnp.float32) * 0.05
    # PyTorch linear2.weight is [1, hidden]; keep it as a row [1, hidden].
    w2 = jax.random.normal(k3, (1, hidden_size), jnp.float32) * 0.05
    b2 = jax.random.normal(k4, (1, 1), jnp.float32) * 0.05
    return w1, b1, w2, b2


if __name__ == "__main__":
    # config.in_dim = 128, config.hidden_size = 32. Batch 256 exercises the
    # batch-tiled grid (2 parallel steps of 128 rows -> both v7x TCs busy).
    batch, in_dim, hidden_size = 256, 128, 32

    key = jax.random.PRNGKey(0)
    kx, kp = jax.random.split(key)
    x = jax.random.normal(kx, (batch, in_dim), jnp.float32)
    w1, b1, w2, b2 = init_params(kp, in_dim, hidden_size)

    out = jax.block_until_ready(policy_net_forward(x, w1, b1, w2, b2))
    assert out.shape == (batch, 1)

    # Loose check vs. the exact PyTorch-equivalent f32 math (bf16 matmul +
    # approx reciprocal introduce small, bounded error; output is in (0, 1)).
    ref_f32 = jax.nn.sigmoid(
        jnp.sum(jnp.maximum(x @ w1 + b1, 0.0) * w2, axis=-1, keepdims=True) + b2[0, 0])
    assert jnp.allclose(out, ref_f32, atol=2e-2), "mismatch vs f32 reference"

    # Tight check vs. a reference using the same bf16 MXU operands.
    ref_h = jnp.dot(x.astype(jnp.bfloat16), w1.astype(jnp.bfloat16),
                    preferred_element_type=jnp.float32)
    ref_bf = jax.nn.sigmoid(
        jnp.sum(jnp.maximum(ref_h + b1, 0.0) * w2, axis=-1, keepdims=True) + b2[0, 0])
    assert jnp.allclose(out, ref_bf, atol=2e-3), "mismatch vs bf16 reference"

    print("KERNEL_OK")
</pallas_src>

<mosaic_0001>
module attributes {stable_mosaic.version = 11 : i64} {
  func.func @policy_net_kernel(%arg0: i32, %arg1: memref<128x128xf32, #tpu.memory_space<vmem>>, %arg2: memref<128x32xbf16, #tpu.memory_space<vmem>>, %arg3: memref<2x32xf32, #tpu.memory_space<vmem>>, %arg4: memref<1x1xf32, #tpu.memory_space<smem>>, %arg5: memref<1x128xf32, #tpu.memory_space<vmem>>) attributes {dimension_semantics = [#tpu.dimension_semantics<parallel>], iteration_bounds = array<i64: 2>, scalar_prefetch = 0 : i64, scratch_operands = 0 : i64, tpu.core_type = #tpu.core_type<tc>, window_params = [{transform_indices = @transform_0, window_bounds = array<i64: 128, 128>}, {pipeline_mode = #tpu.pipeline_mode<synchronous>, transform_indices = @transform_1, window_bounds = array<i64: 128, 32>}, {pipeline_mode = #tpu.pipeline_mode<synchronous>, transform_indices = @transform_2, window_bounds = array<i64: 2, 32>}, {transform_indices = @transform_3, window_bounds = array<i64: 1, 1>}, {transform_indices = @transform_4, window_bounds = array<i64: 1, 128>}]} {
    %c0 = arith.constant 0 : index
    %c0_0 = arith.constant 0 : index
    %0 = vector.load %arg1[%c0, %c0_0] : memref<128x128xf32, #tpu.memory_space<vmem>>, vector<128x128xf32>
    %1 = arith.truncf %0 : vector<128x128xf32> to vector<128x128xbf16>
    %c0_1 = arith.constant 0 : index
    %c0_2 = arith.constant 0 : index
    %2 = vector.load %arg2[%c0_1, %c0_2] : memref<128x32xbf16, #tpu.memory_space<vmem>>, vector<128x32xbf16>
    %cst = arith.constant dense<0.000000e+00> : vector<128x32xf32>
    %3 = tpu.matmul %1, %2, %cst {dimension_numbers = #tpu.dot_dimension_numbers<[1], [0], [0], [1], [0, 0, 1, 1], [], []>} : vector<128x128xbf16>, vector<128x32xbf16>, vector<128x32xf32> -> vector<128x32xf32>
    %c0_3 = arith.constant 0 : index
    %c0_4 = arith.constant 0 : index
    %4 = vector.load %arg3[%c0_3, %c0_4] : memref<2x32xf32, #tpu.memory_space<vmem>>, vector<1x32xf32>
    %5 = vector.broadcast %4 : vector<1x32xf32> to vector<128x32xf32>
    %6 = arith.addf %3, %5 : vector<128x32xf32>
    %cst_5 = arith.constant 0.000000e+00 : f32
    %7 = vector.broadcast %cst_5 : f32 to vector<128x32xf32>
    %8 = arith.maximumf %6, %7 : vector<128x32xf32>
    %c1 = arith.constant 1 : index
    %c0_6 = arith.constant 0 : index
    %9 = vector.load %arg3[%c1, %c0_6] : memref<2x32xf32, #tpu.memory_space<vmem>>, vector<1x32xf32>
    %cst_7 = arith.constant dense<0.000000e+00> : vector<1x128xf32>
    %10 = tpu.matmul %9, %8, %cst_7 {dimension_numbers = #tpu.dot_dimension_numbers<[1], [1], [0], [0], [0, 0, 1, 0], [], []>} : vector<1x32xf32>, vector<128x32xf32>, vector<1x128xf32> -> vector<1x128xf32>
    %c0_8 = arith.constant 0 : index
    %c0_9 = arith.constant 0 : index
    %11 = memref.load %arg4[%c0_8, %c0_9] : memref<1x1xf32, #tpu.memory_space<smem>>
    %12 = vector.broadcast %11 : f32 to vector<1x128xf32>
    %13 = arith.addf %10, %12 : vector<1x128xf32>
    %cst_10 = arith.constant 0.000000e+00 : f32
    %14 = vector.broadcast %cst_10 : f32 to vector<1x128xf32>
    %15 = arith.subf %14, %13 : vector<1x128xf32>
    %16 = math.exp %15 : vector<1x128xf32>
    %cst_11 = arith.constant 1.000000e+00 : f32
    %17 = vector.broadcast %cst_11 : f32 to vector<1x128xf32>
    %18 = arith.addf %17, %16 : vector<1x128xf32>
    %19 = tpu.reciprocal %18 {approx = true} : vector<1x128xf32> -> vector<1x128xf32>
    %c0_12 = arith.constant 0 : index
    %c0_13 = arith.constant 0 : index
    %20 = vector.load %arg5[%c0_12, %c0_13] : memref<1x128xf32, #tpu.memory_space<vmem>>, vector<1x128xf32>
    tpu.vector_store %arg5[%c0_12, %c0_13], %19 {strides = array<i32>} : memref<1x128xf32, #tpu.memory_space<vmem>>, vector<1x128xf32>,
    return
  }
  func.func @transform_0(%arg0: i32) -> (i32, i32) {
    %c0_i32 = arith.constant 0 : i32
    %c0_i32_0 = arith.constant 0 : i32
    return %arg0, %c0_i32 : i32, i32
  }
  func.func @transform_1(%arg0: i32) -> (i32, i32) {
    %c0_i32 = arith.constant 0 : i32
    %c0_i32_0 = arith.constant 0 : i32
    %c0_i32_1 = arith.constant 0 : i32
    return %c0_i32, %c0_i32_0 : i32, i32
  }
  func.func @transform_2(%arg0: i32) -> (i32, i32) {
    %c0_i32 = arith.constant 0 : i32
    %c0_i32_0 = arith.constant 0 : i32
    %c0_i32_1 = arith.constant 0 : i32
    return %c0_i32, %c0_i32_0 : i32, i32
  }
  func.func @transform_3(%arg0: i32) -> (i32, i32) {
    %c0_i32 = arith.constant 0 : i32
    %c0_i32_0 = arith.constant 0 : i32
    %c0_i32_1 = arith.constant 0 : i32
    return %c0_i32, %c0_i32_0 : i32, i32
  }
  func.func @transform_4(%arg0: i32) -> (i32, i32) {
    %c0_i32 = arith.constant 0 : i32
    %c0_i32_0 = arith.constant 0 : i32
    return %c0_i32, %arg0 : i32, i32
  }
}

</mosaic_0001>

<llo_original>
// kernel: tpu_custom_call.1
$region0: #{tpu_custom_call.1}
  #allocation0 [shape = 'u32[]', space=smem, size = 0x4, offset = 0x4, fixed_abs, tag = 'smem constant byte address 0x4 - core index']
  #allocation1 [shape = 'u32[144,128]{1,0:T(1,128)}', space=vmem, size = 0x12000, scoped, tag = 'internal scratch']
  #allocation2 [shape = 'f32[1,1]{1,0:T(1,128)S(6)}', space=smem, size = 0x200, scoped, tag = 'scoped memory for tpu_custom_call.1']
  %s0 = inlined_call_operand.hbm [shape: f32[256,128], index: 0, kind: input, shape index: {}]
  %s1 = inlined_call_operand.vmem [shape: bf16[128,32], index: 1, kind: input, shape index: {}]
  %s2 = inlined_call_operand.vmem [shape: f32[2,32], index: 2, kind: input, shape index: {}]
  %s3 = inlined_call_operand.<no memory space> [shape: f32[1,1], index: 3, kind: input, shape index: {}]
  %s4 = inlined_call_operand.hbm [shape: f32[1,256], index: 4, kind: output, shape index: {}]
  %s5 = sld [smem:[#allocation0]]
  $region53: #{tpu_custom_call.1} parent=0
    _
  %s7 = ssub.s32 1, %s5
  %s8 = scalar_select 0, %s7, %s5
  %9 = sst [smem:[#allocation2]] %s3
  $region1: #{tpu_custom_call.1} parent=0
    #allocation3 [shape = 'u8[131072]{0}', space=vmem, size = 0x20000, scoped, tag = 'input window, operand 0']
    #allocation4 [shape = 's32[2]{0}', space=sflag, size = 0x8, scoped, tag = 'scoped memory for tpu_custom_call.1']
    #allocation5 [shape = 's32[2]{0}', space=sflag, size = 0x8, scoped, tag = 'scoped memory for tpu_custom_call.1']
    #allocation6 [shape = 'u8[1024]{0}', space=vmem, size = 0x400, scoped, tag = 'output window, operand 0']
    %10 = vsyncpa [#allocation4], 0
    %s11 = scalar_lea.sflag [#allocation4], 1
    %12 = vsyncpa %s11, 0
    %13 = vsyncpa [#allocation5], 0
    %s14 = scalar_lea.sflag [#allocation5], 1
    %15 = vsyncpa %s14, 0
    loop: start=0, step=1, limit=4
    $region2: #{tpu_custom_call.1} parent=1 // loop_pre_header
      _
    $region3: #{tpu_custom_call.1} parent=1 // loop_header
      %s17 = sphi 0, %s21
      %p18 = scmp.ge.s32.totalorder %s17, 4
      %s27 = sphi 0, %s29
      %s30 = sphi 0, %s27
      %s31 = sphi 0, %s30
      %s47 = sphi 0, %s31
      %s51 = sphi 0, %s51
      %s53 = sphi 0, %s51
      %s54 = sphi 0, %s53
      %s68 = sphi 0, %s54
      %s72 = sphi 0, %s72
      %s74 = sphi 0, %s72
      %s75 = sphi 0, %s74
      %s89 = sphi 0, %s75
      %s93 = sphi 0, %s93
      %s95 = sphi 0, %s93
      %s96 = sphi 0, %s95
      %s110 = sphi 0, %s96
      %s116 = sphi 0, %s118
      %s119 = sphi 0, %s116
      %s120 = sphi 0, %s119
      %s136 = sphi 0, %s120
    $region4: #{tpu_custom_call.1} parent=1 // loop_header_branch
      %20 = sbr.rel (%p18) target = $region8
    $region5: #{tpu_custom_call.1} parent=1 // loop_body
      %s22 = ssub.s32 %s17, 1
      %s23 = ssub.s32 %s17, 2
      %s24 = sadd.s32 %s17, 1
      %s25 = ssub.s32 %s17, %s24
      %p26 = scmp.eq.s32.totalorder %s25, 0
      %s28 = sadd.s32 %s27, 1
      %s29 = scalar_select %p26, %s27, %s28
      %p32 = pneg %p26
      %p33 = scmp.eq.s32.totalorder %s17, 1
      %p34 = por %p32, %p33
      %p35 = scmp.ne.s32.totalorder %s27, %s30
      %p36 = scmp.eq.s32.totalorder %s17, 0
      %p37 = por %p35, %p36
      %p38 = scmp.ne.s32.totalorder %s27, %s30
      %p39 = scmp.eq.s32.totalorder %s22, 1
      %p40 = por %p38, %p39
      %p41 = scmp.ne.s32.totalorder %s30, %s31
      %p42 = scmp.eq.s32.totalorder %s22, 0
      %p43 = por %p41, %p42
      %p44 = scmp.ne.s32.totalorder %s30, %s31
      %p45 = scmp.eq.s32.totalorder %s23, 1
      %p46 = por %p44, %p45
      %p48 = scmp.ne.s32.totalorder %s31, %s47
      %p49 = scmp.eq.s32.totalorder %s23, 0
      %p50 = por %p48, %p49
      %s52 = sadd.s32 %s51, 1
      %p55 = scmp.eq.s32.totalorder %s17, 1
      %p56 = scmp.ne.s32.totalorder %s51, %s53
      %p57 = scmp.eq.s32.totalorder %s17, 0
      %p58 = por %p56, %p57
      %p59 = scmp.ne.s32.totalorder %s51, %s53
      %p60 = scmp.eq.s32.totalorder %s22, 1
      %p61 = por %p59, %p60
      %p62 = scmp.ne.s32.totalorder %s53, %s54
      %p63 = scmp.eq.s32.totalorder %s22, 0
      %p64 = por %p62, %p63
      %p65 = scmp.ne.s32.totalorder %s53, %s54
      %p66 = scmp.eq.s32.totalorder %s23, 1
      %p67 = por %p65, %p66
      %p69 = scmp.ne.s32.totalorder %s54, %s68
      %p70 = scmp.eq.s32.totalorder %s23, 0
      %p71 = por %p69, %p70
      %s73 = sadd.s32 %s72, 1
      %p76 = scmp.eq.s32.totalorder %s17, 1
      %p77 = scmp.ne.s32.totalorder %s72, %s74
      %p78 = scmp.eq.s32.totalorder %s17, 0
      %p79 = por %p77, %p78
      %p80 = scmp.ne.s32.totalorder %s72, %s74
      %p81 = scmp.eq.s32.totalorder %s22, 1
      %p82 = por %p80, %p81
      %p83 = scmp.ne.s32.totalorder %s74, %s75
      %p84 = scmp.eq.s32.totalorder %s22, 0
      %p85 = por %p83, %p84
      %p86 = scmp.ne.s32.totalorder %s74, %s75
      %p87 = scmp.eq.s32.totalorder %s23, 1
      %p88 = por %p86, %p87
      %p90 = scmp.ne.s32.totalorder %s75, %s89
      %p91 = scmp.eq.s32.totalorder %s23, 0
      %p92 = por %p90, %p91
      %s94 = sadd.s32 %s93, 1
      %p97 = scmp.eq.s32.totalorder %s17, 1
      %p98 = scmp.ne.s32.totalorder %s93, %s95
      %p99 = scmp.eq.s32.totalorder %s17, 0
      %p100 = por %p98, %p99
      %p101 = scmp.ne.s32.totalorder %s93, %s95
      %p102 = scmp.eq.s32.totalorder %s22, 1
      %p103 = por %p101, %p102
      %p104 = scmp.ne.s32.totalorder %s95, %s96
      %p105 = scmp.eq.s32.totalorder %s22, 0
      %p106 = por %p104, %p105
      %p107 = scmp.ne.s32.totalorder %s95, %s96
      %p108 = scmp.eq.s32.totalorder %s23, 1
      %p109 = por %p107, %p108
      %p111 = scmp.ne.s32.totalorder %s96, %s110
      %p112 = scmp.eq.s32.totalorder %s23, 0
      %p113 = por %p111, %p112
      %s114 = ssub.s32 %s17, %s24
      %p115 = scmp.eq.s32.totalorder %s114, 0
      %s117 = sadd.s32 %s116, 1
      %s118 = scalar_select %p115, %s116, %s117
      %p121 = pneg %p115
      %p122 = scmp.eq.s32.totalorder %s17, 1
      %p123 = por %p121, %p122
      %p124 = scmp.ne.s32.totalorder %s116, %s119
      %p125 = scmp.eq.s32.totalorder %s17, 0
      %p126 = por %p124, %p125
      %p127 = scmp.ne.s32.totalorder %s116, %s119
      %p128 = scmp.eq.s32.totalorder %s22, 1
      %p129 = por %p127, %p128
      %p130 = scmp.ne.s32.totalorder %s119, %s120
      %p131 = scmp.eq.s32.totalorder %s22, 0
      %p132 = por %p130, %p131
      %p133 = scmp.ne.s32.totalorder %s119, %s120
      %p134 = scmp.eq.s32.totalorder %s23, 1
      %p135 = por %p133, %p134
      %p137 = scmp.ne.s32.totalorder %s120, %s136
      %p138 = scmp.eq.s32.totalorder %s23, 0
      %p139 = por %p137, %p138
      %p140 = scmp.le.s32.totalorder 1, %s17
      %p141 = scmp.lt.s32.totalorder %s17, 3
      %p142 = pnand %p140, %p141
      %p143 = pneg %p142
      // Predicated region
      $region9: #{tpu_custom_call.1} parent=5 // pred_check
        _
      $region10: #{tpu_custom_call.1} parent=5 // pred_check_branch
        %145 = sbr.rel (%p142) target = $region12
      $region11: #{tpu_custom_call.1} parent=5 // pred_region
        %s146 = ssub.s32 %s17, 1
        // Predicated region
        $region13: #{tpu_custom_call.1} parent=11 // pred_check
          %p147 = pneg %p64
        $region14: #{tpu_custom_call.1} parent=11 // pred_check_branch
          %149 = sbr.rel (%p147) target = $region16
        $region15: #{tpu_custom_call.1} parent=11 // pred_region
          _
        $region16: #{tpu_custom_call.1} parent=11 // pred_fallthru
          _
        // Predicated region
        $region17: #{tpu_custom_call.1} parent=11 // pred_check
          %p150 = pneg %p85
        $region18: #{tpu_custom_call.1} parent=11 // pred_check_branch
          %152 = sbr.rel (%p150) target = $region20
        $region19: #{tpu_custom_call.1} parent=11 // pred_region
          _
        $region20: #{tpu_custom_call.1} parent=11 // pred_fallthru
          _
        // Predicated region
        $region21: #{tpu_custom_call.1} parent=11 // pred_check
          %p153 = pneg %p106
        $region22: #{tpu_custom_call.1} parent=11 // pred_check_branch
          %155 = sbr.rel (%p153) target = $region24
        $region23: #{tpu_custom_call.1} parent=11 // pred_region
          _
        $region24: #{tpu_custom_call.1} parent=11 // pred_fallthru
          _
      $region12: #{tpu_custom_call.1} parent=5 // pred_fallthru
        _
      %p156 = scmp.lt.s32.totalorder %s17, 2
      // Predicated region
      $region25: #{tpu_custom_call.1} parent=5 // pred_check
        %p157 = pneg %p156
      $region26: #{tpu_custom_call.1} parent=5 // pred_check_branch
        %159 = sbr.rel (%p157) target = $region28
      $region27: #{tpu_custom_call.1} parent=5 // pred_region
        // Predicated region
        $region29: #{tpu_custom_call.1} parent=27 // pred_check
          %p160 = pneg %p37
        $region30: #{tpu_custom_call.1} parent=27 // pred_check_branch
          %162 = sbr.rel (%p160) target = $region32
        $region31: #{tpu_custom_call.1} parent=27 // pred_region
          %s163 = sand.u32 %s27, 1
          %s164 = scalar_lea.sflag [#allocation4], %s163
          %s165 = sand.u32 %s27, 1
          %s166 = smul.addr %s165, 128
          %s167 = scalar_lea.vmem [#allocation3], %s166
          %s168 = smul.u32 16, %s17
          %s170 = ssub.s32 2048, 2048
          %171 = vsyncadd %s164, %s170
          %s172 = smul.addr %s168, 128
          %s173 = scalar_lea.hbm %s0, %s172
          %s174 = sshll.u32 %s167, 4
          %s175 = int_to_ptr.vmem [resolvable:$true] %s174
          %180 = dma.hbm_to_vmem [thread:$0]  %s173, 2048, %s175, %s164, 128, 128, 8
        $region32: #{tpu_custom_call.1} parent=27 // pred_fallthru
          _
      $region28: #{tpu_custom_call.1} parent=5 // pred_fallthru
        _
      %p181 = scmp.le.s32.totalorder 1, %s17
      %p182 = scmp.lt.s32.totalorder %s17, 3
      %p183 = pnand %p181, %p182
      %p184 = pneg %p183
      // Predicated region
      $region33: #{tpu_custom_call.1} parent=5 // pred_check
        _
      $region34: #{tpu_custom_call.1} parent=5 // pred_check_branch
        %186 = sbr.rel (%p183) target = $region36
      $region35: #{tpu_custom_call.1} parent=5 // pred_region
        %s187 = ssub.s32 %s17, 1
        %s188 = sand.u32 %s30, 1
        %s189 = scalar_lea.sflag [#allocation4], %s188
        %s190 = sand.u32 %s30, 1
        %s191 = smul.addr %s190, 128
        %s192 = scalar_lea.vmem [#allocation3], %s191
        // Predicated region
        $region37: #{tpu_custom_call.1} parent=35 // pred_check
          %p193 = pneg %p43
        $region38: #{tpu_custom_call.1} parent=35 // pred_check_branch
          %195 = sbr.rel (%p193) target = $region40
        $region39: #{tpu_custom_call.1} parent=35 // pred_region
          %196 = dma.done %s189, 2048
        $region40: #{tpu_custom_call.1} parent=35 // pred_fallthru
          _
        %s197 = sand.u32 %s30, 1
        %s198 = scalar_lea.sflag [#allocation4], %s197
        %s199 = sand.u32 %s30, 1
        %s200 = smul.addr %s199, 128
        %s201 = scalar_lea.vmem [#allocation3], %s200
        %p202 = pneg %p43
        %p203 = pneg %p40
        %p204 = pneg %p64
        %p205 = pneg %p61
        %p206 = pneg %p85
        %p207 = pneg %p82
        %p208 = pneg %p106
        %p209 = pneg %p103
        %p210 = pneg %p132
        %p211 = pneg %p129
        %s212 = sand.u32 %s119, 1
        %s213 = scalar_lea.sflag [#allocation5], %s212
        %s214 = sand.u32 %s119, 1
        %s215 = scalar_lea.vmem [#allocation6], %s214
        %s216 = smul.u32 16, %s22
        %v218 = vld [vmem:[%s192] sm:$0xff]
        %v219 = vld [vmem:[%s192 + $0x8] sm:$0xff]
        %v220 = vld [vmem:[%s192 + $0x10] sm:$0xff]
        %v221 = vld [vmem:[%s192 + $0x18] sm:$0xff]
        %v222 = vld [vmem:[%s192 + $0x20] sm:$0xff]
        %v223 = vld [vmem:[%s192 + $0x28] sm:$0xff]
        %v224 = vld [vmem:[%s192 + $0x30] sm:$0xff]
        %v225 = vld [vmem:[%s192 + $0x38] sm:$0xff]
        %v226 = vld [vmem:[%s192 + $0x40] sm:$0xff]
        %v227 = vld [vmem:[%s192 + $0x48] sm:$0xff]
        %v228 = vld [vmem:[%s192 + $0x50] sm:$0xff]
        %v229 = vld [vmem:[%s192 + $0x58] sm:$0xff]
        %v230 = vld [vmem:[%s192 + $0x60] sm:$0xff]
        %v231 = vld [vmem:[%s192 + $0x68] sm:$0xff]
        %v232 = vld [vmem:[%s192 + $0x70] sm:$0xff]
        %v233 = vld [vmem:[%s192 + $0x78] sm:$0xff]
        %v234 = vpack.c.bf16 %v219, %v218
        %v235 = vpack.c.bf16 %v221, %v220
        %v236 = vpack.c.bf16 %v223, %v222
        %v237 = vpack.c.bf16 %v225, %v224
        %v238 = vpack.c.bf16 %v227, %v226
        %v239 = vpack.c.bf16 %v229, %v228
        %v240 = vpack.c.bf16 %v231, %v230
        %v241 = vpack.c.bf16 %v233, %v232
        %v242 = vld [vmem:[%s1] sm:$0xf]
        %v243 = vld [vmem:[%s1 + $0x4] sm:$0xf]
        %v244 = vld [vmem:[%s1 + $0x8] sm:$0xf]
        %v245 = vld [vmem:[%s1 + $0xc] sm:$0xf]
        %v246 = vld [vmem:[%s1 + $0x10] sm:$0xf]
        %v247 = vld [vmem:[%s1 + $0x14] sm:$0xf]
        %v248 = vld [vmem:[%s1 + $0x18] sm:$0xf]
        %v249 = vld [vmem:[%s1 + $0x1c] sm:$0xf]
        %v250 = vld [vmem:[%s1 + $0x20] sm:$0xf]
        %v251 = vld [vmem:[%s1 + $0x24] sm:$0xf]
        %v252 = vld [vmem:[%s1 + $0x28] sm:$0xf]
        %v253 = vld [vmem:[%s1 + $0x2c] sm:$0xf]
        %v254 = vld [vmem:[%s1 + $0x30] sm:$0xf]
        %v255 = vld [vmem:[%s1 + $0x34] sm:$0xf]
        %v256 = vld [vmem:[%s1 + $0x38] sm:$0xf]
        %v257 = vld [vmem:[%s1 + $0x3c] sm:$0xf]
        %v258 = vld [vmem:[%s2] sm:$0x1]
        %v259 = vlaneseq
        %v260 = vshrl.u32 %v259, 7
        %v261 = vsub.s32 0, %v260
        %v262 = vrot.slane %v258, %v261
        %v279 = vunpack.c.l.b16 %v242
        %v280 = vunpack.c.l.b16 %v243
        %v281 = vunpack.c.l.b16 %v244
        %v282 = vunpack.c.l.b16 %v245
        %v283 = vunpack.c.l.b16 %v246
        %v284 = vunpack.c.l.b16 %v247
        %v285 = vunpack.c.l.b16 %v248
        %v286 = vunpack.c.l.b16 %v249
        %v287 = vunpack.c.l.b16 %v250
        %v288 = vunpack.c.l.b16 %v251
        %v289 = vunpack.c.l.b16 %v252
        %v290 = vunpack.c.l.b16 %v253
        %v291 = vunpack.c.l.b16 %v254
        %v292 = vunpack.c.l.b16 %v255
        %v293 = vunpack.c.l.b16 %v256
        %v294 = vunpack.c.l.b16 %v257
        %v295 = vpack.c.b16 %v280, %v279
        %v296 = vpack.c.b16 %v282, %v281
        %v297 = vpack.c.b16 %v284, %v283
        %v298 = vpack.c.b16 %v286, %v285
        %v299 = vpack.c.b16 %v288, %v287
        %v300 = vpack.c.b16 %v290, %v289
        %v301 = vpack.c.b16 %v292, %v291
        %v302 = vpack.c.b16 %v294, %v293
        %311 = vmatprep.subr.bf16.mxu0 0
        %312 = vmatpush1.bf16.msra.mxu0 %v302
        %313 = vmatprep.subr.bf16.mxu0 0
        %314 = vmatpush1.bf16.msra.mxu0 %v301
        %315 = vmatprep.subr.bf16.mxu0 0
        %316 = vmatpush1.bf16.msra.mxu0 %v300
        %317 = vmatprep.subr.bf16.mxu0 0
        %318 = vmatpush1.bf16.msra.mxu0 %v299
        %319 = vmatprep.subr.bf16.mxu0 0
        %320 = vmatpush1.bf16.msra.mxu0 %v298
        %321 = vmatprep.subr.bf16.mxu0 0
        %322 = vmatpush1.bf16.msra.mxu0 %v297
        %323 = vmatprep.subr.bf16.mxu0 0
        %324 = vmatpush1.bf16.msra.mxu0 %v296
        %325 = vmatprep.subr.bf16.mxu0 0
        %326 = vmatpush1.bf16.msra.mxu0 %v295
        %327 = vmatprep.subr.bf16.mxu0 0
        %328 = vmatpush2.bf16.msra.mxu0 0
        %329 = vmatprep.subr.bf16.mxu0 0
        %330 = vmatpush2.bf16.msra.mxu0 0
        %331 = vmatprep.subr.bf16.mxu0 0
        %332 = vmatpush2.bf16.msra.mxu0 0
        %333 = vmatprep.subr.bf16.mxu0 0
        %334 = vmatpush2.bf16.msra.mxu0 0
        %335 = vmatprep.subr.bf16.mxu0 0
        %336 = vmatpush2.bf16.msra.mxu0 0
        %337 = vmatprep.subr.bf16.mxu0 0
        %338 = vmatpush2.bf16.msra.mxu0 0
        %339 = vmatprep.subr.bf16.mxu0 0
        %340 = vmatpush2.bf16.msra.mxu0 0
        %341 = vmatprep.subr.bf16.mxu0 0
        %342 = vmatpush2.bf16.msra.mxu0 0
        %343 = vmatprep.mubr.bf16.mxu0 0
        %344 = vmatmul.mubr.bf16.gmra.mxu0 %v234
        %v345 = vpop.f32.mrf.mxu0
        %v346 = vadd.f32 %v262, %v345
        %v347 = vpop.f32.mrf.mxu0
        %v348 = vpop.f32.mrf.mxu0
        %v349 = vadd.f32 %v262, %v348
        %v350 = vpop.f32.mrf.mxu0
        %351 = vmatprep.mubr.bf16.mxu0 0
        %352 = vmatmul.mubr.bf16.gmra.mxu0 %v235
        %v353 = vpop.f32.mrf.mxu0
        %v354 = vadd.f32 %v262, %v353
        %v355 = vpop.f32.mrf.mxu0
        %v356 = vpop.f32.mrf.mxu0
        %v357 = vadd.f32 %v262, %v356
        %v358 = vpop.f32.mrf.mxu0
        %359 = vmatprep.mubr.bf16.mxu0 0
        %360 = vmatmul.mubr.bf16.gmra.mxu0 %v236
        %v361 = vpop.f32.mrf.mxu0
        %v362 = vadd.f32 %v262, %v361
        %v363 = vpop.f32.mrf.mxu0
        %v364 = vpop.f32.mrf.mxu0
        %v365 = vadd.f32 %v262, %v364
        %v366 = vpop.f32.mrf.mxu0
        %367 = vmatprep.mubr.bf16.mxu0 0
        %368 = vmatmul.mubr.bf16.gmra.mxu0 %v237
        %v369 = vpop.f32.mrf.mxu0
        %v370 = vadd.f32 %v262, %v369
        %v371 = vpop.f32.mrf.mxu0
        %v372 = vpop.f32.mrf.mxu0
        %v373 = vadd.f32 %v262, %v372
        %v374 = vpop.f32.mrf.mxu0
        %375 = vmatprep.mubr.bf16.mxu0 0
        %376 = vmatmul.mubr.bf16.gmra.mxu0 %v238
        %v377 = vpop.f32.mrf.mxu0
        %v378 = vadd.f32 %v262, %v377
        %v379 = vpop.f32.mrf.mxu0
        %v380 = vpop.f32.mrf.mxu0
        %v381 = vadd.f32 %v262, %v380
        %v382 = vpop.f32.mrf.mxu0
        %383 = vmatprep.mubr.bf16.mxu0 0
        %384 = vmatmul.mubr.bf16.gmra.mxu0 %v239
        %v385 = vpop.f32.mrf.mxu0
        %v386 = vadd.f32 %v262, %v385
        %v387 = vpop.f32.mrf.mxu0
        %v388 = vpop.f32.mrf.mxu0
        %v389 = vadd.f32 %v262, %v388
        %v390 = vpop.f32.mrf.mxu0
        %391 = vmatprep.mubr.bf16.mxu0 0
        %392 = vmatmul.mubr.bf16.gmra.mxu0 %v240
        %v393 = vpop.f32.mrf.mxu0
        %v394 = vadd.f32 %v262, %v393
        %v395 = vpop.f32.mrf.mxu0
        %v396 = vpop.f32.mrf.mxu0
        %v397 = vadd.f32 %v262, %v396
        %v398 = vpop.f32.mrf.mxu0
        %399 = vmatprep.mubr.bf16.mxu0 0
        %400 = vmatmul.mubr.bf16.gmra.mxu0 %v241
        %v401 = vpop.f32.mrf.mxu0
        %v402 = vadd.f32 %v262, %v401
        %v403 = vpop.f32.mrf.mxu0
        %v404 = vpop.f32.mrf.mxu0
        %v405 = vadd.f32 %v262, %v404
        %v406 = vpop.f32.mrf.mxu0
        %407 = vdwg.mxu0
        %v408 = vmax.f32 %v346, 0.0
        %v409 = vmax.f32 %v349, 0.0
        %v410 = vmax.f32 %v354, 0.0
        %v411 = vmax.f32 %v357, 0.0
        %v412 = vmax.f32 %v362, 0.0
        %v413 = vmax.f32 %v365, 0.0
        %v414 = vmax.f32 %v370, 0.0
        %v415 = vmax.f32 %v373, 0.0
        %v416 = vmax.f32 %v378, 0.0
        %v417 = vmax.f32 %v381, 0.0
        %v418 = vmax.f32 %v386, 0.0
        %v419 = vmax.f32 %v389, 0.0
        %v420 = vmax.f32 %v394, 0.0
        %v421 = vmax.f32 %v397, 0.0
        %v422 = vmax.f32 %v402, 0.0
        %v423 = vmax.f32 %v405, 0.0
        %v424 = vld [vmem:[%s2 + $0x1] sm:$0x1]
        %s425 = sld [smem:[#allocation2]]
        %v426 = vstv %s425
        %vm427 = vcmask 261120
        %v429 = vsel %vm427, %v424, 0
        %v432 = vsel %vm427, %v408, 0
        %v435 = vsel %vm427, %v409, 0
        %v438 = vsel %vm427, %v410, 0
        %v441 = vsel %vm427, %v411, 0
        %v444 = vsel %vm427, %v412, 0
        %v447 = vsel %vm427, %v413, 0
        %v450 = vsel %vm427, %v414, 0
        %v453 = vsel %vm427, %v415, 0
        %v456 = vsel %vm427, %v416, 0
        %v459 = vsel %vm427, %v417, 0
        %v462 = vsel %vm427, %v418, 0
        %v465 = vsel %vm427, %v419, 0
        %v468 = vsel %vm427, %v420, 0
        %v471 = vsel %vm427, %v421, 0
        %v474 = vsel %vm427, %v422, 0
        %v477 = vsel %vm427, %v423, 0
        %479 = vmatprep.subr.mxu0 0.0
        %480 = vmatpush1.xpose.msra.mxu0 %v477
        %481 = vmatprep.subr.mxu0 0.0
        %482 = vmatpush1.xpose.msra.mxu0 %v474
        %483 = vmatprep.subr.mxu0 0.0
        %484 = vmatpush1.xpose.msra.mxu0 %v471
        %485 = vmatprep.subr.mxu0 0.0
        %486 = vmatpush1.xpose.msra.mxu0 %v468
        %487 = vmatprep.subr.mxu0 0.0
        %488 = vmatpush1.xpose.msra.mxu0 %v465
        %489 = vmatprep.subr.mxu0 0.0
        %490 = vmatpush1.xpose.msra.mxu0 %v462
        %491 = vmatprep.subr.mxu0 0.0
        %492 = vmatpush1.xpose.msra.mxu0 %v459
        %493 = vmatprep.subr.mxu0 0.0
        %494 = vmatpush1.xpose.msra.mxu0 %v456
        %495 = vmatprep.subr.mxu0 0.0
        %496 = vmatpush1.xpose.msra.mxu0 %v453
        %497 = vmatprep.subr.mxu0 0.0
        %498 = vmatpush1.xpose.msra.mxu0 %v450
        %499 = vmatprep.subr.mxu0 0.0
        %500 = vmatpush1.xpose.msra.mxu0 %v447
        %501 = vmatprep.subr.mxu0 0.0
        %502 = vmatpush1.xpose.msra.mxu0 %v444
        %503 = vmatprep.subr.mxu0 0.0
        %504 = vmatpush1.xpose.msra.mxu0 %v441
        %505 = vmatprep.subr.mxu0 0.0
        %506 = vmatpush1.xpose.msra.mxu0 %v438
        %507 = vmatprep.subr.mxu0 0.0
        %508 = vmatpush1.xpose.msra.mxu0 %v435
        %509 = vmatprep.subr.mxu0 0.0
        %510 = vmatpush1.xpose.msra.mxu0 %v432
        %511 = vmatprep.subr.mxu0 0.0
        %512 = vmatpush2.xpose.msra.mxu0 0.0
        %513 = vmatprep.subr.mxu0 0.0
        %514 = vmatpush2.xpose.msra.mxu0 0.0
        %515 = vmatprep.subr.mxu0 0.0
        %516 = vmatpush2.xpose.msra.mxu0 0.0
        %517 = vmatprep.subr.mxu0 0.0
        %518 = vmatpush2.xpose.msra.mxu0 0.0
        %519 = vmatprep.subr.mxu0 0.0
        %520 = vmatpush2.xpose.msra.mxu0 0.0
        %521 = vmatprep.subr.mxu0 0.0
        %522 = vmatpush2.xpose.msra.mxu0 0.0
        %523 = vmatprep.subr.mxu0 0.0
        %524 = vmatpush2.xpose.msra.mxu0 0.0
        %525 = vmatprep.subr.mxu0 0.0
        %526 = vmatpush2.xpose.msra.mxu0 0.0
        %527 = vmatprep.subr.mxu0 0.0
        %528 = vmatpush2.xpose.msra.mxu0 0.0
        %529 = vmatprep.subr.mxu0 0.0
        %530 = vmatpush2.xpose.msra.mxu0 0.0
        %531 = vmatprep.subr.mxu0 0.0
        %532 = vmatpush2.xpose.msra.mxu0 0.0
        %533 = vmatprep.subr.mxu0 0.0
        %534 = vmatpush2.xpose.msra.mxu0 0.0
        %535 = vmatprep.subr.mxu0 0.0
        %536 = vmatpush2.xpose.msra.mxu0 0.0
        %537 = vmatprep.subr.mxu0 0.0
        %538 = vmatpush2.xpose.msra.mxu0 0.0
        %539 = vmatprep.subr.mxu0 0.0
        %540 = vmatpush2.xpose.msra.mxu0 0.0
        %541 = vmatprep.subr.mxu0 0.0
        %542 = vmatpush2.xpose.msra.mxu0 0.0
        %543 = vmatprep.mubr.f32.mxu0 0.0
        %544 = vmatmul.mubr.f32.gmra.mxu0 %v429
        %v545 = vpop.f32.mrf.mxu0
        %v546 = vadd.f32 %v426, %v545
        %v547 = vpop.f32.mrf.mxu0
        %548 = vdwg.mxu0
        %v549 = vsub.f32 0.0, %v546
        %v550 = vmul.f32 %v549, 1.442695
        %v551 = vpow.pop %v550
        %v552 = vadd.f32 %v551, 1.0
        %v553 = vrcp.pop %v552
        %554 = vst [vmem:[%s215] sm:$0x1] %v553
        %s555 = sand.u32 %s119, 1
        %s556 = scalar_lea.sflag [#allocation5], %s555
        %s557 = sand.u32 %s119, 1
        %s558 = scalar_lea.vmem [#allocation6], %s557
        // Predicated region
        $region41: #{tpu_custom_call.1} parent=35 // pred_check
          %p559 = pneg %p129
        $region42: #{tpu_custom_call.1} parent=35 // pred_check_branch
          %561 = sbr.rel (%p559) target = $region44
        $region43: #{tpu_custom_call.1} parent=35 // pred_region
          %s563 = ssub.s32 16, 16
          %564 = vsyncadd %s556, %s563
          %s565 = smul.addr %s22, 16
          %s566 = scalar_lea.hbm %s4, %s565
          %s568 = sshll.u32 %s558, 4
          %s569 = int_to_ptr.vmem [resolvable:$true] %s568
          %571 = dma.vmem_to_hbm [thread:$0]  %s569, 16, %s566, %s556
        $region44: #{tpu_custom_call.1} parent=35 // pred_fallthru
          _
      $region36: #{tpu_custom_call.1} parent=5 // pred_fallthru
        _
      %p572 = scmp.le.s32.totalorder 2, %s17
      // Predicated region
      $region45: #{tpu_custom_call.1} parent=5 // pred_check
        %p573 = pneg %p572
      $region46: #{tpu_custom_call.1} parent=5 // pred_check_branch
        %575 = sbr.rel (%p573) target = $region48
      $region47: #{tpu_custom_call.1} parent=5 // pred_region
        %s576 = ssub.s32 %s17, 2
        // Predicated region
        $region49: #{tpu_custom_call.1} parent=47 // pred_check
          %p577 = pneg %p135
        $region50: #{tpu_custom_call.1} parent=47 // pred_check_branch
          %579 = sbr.rel (%p577) target = $region52
        $region51: #{tpu_custom_call.1} parent=47 // pred_region
          %s580 = sand.u32 %s120, 1
          %s581 = scalar_lea.sflag [#allocation5], %s580
          %s582 = sand.u32 %s120, 1
          %s583 = scalar_lea.vmem [#allocation6], %s582
          %584 = dma.done %s581, 16
        $region52: #{tpu_custom_call.1} parent=47 // pred_fallthru
          _
      $region48: #{tpu_custom_call.1} parent=5 // pred_fallthru
        _
    $region6: #{tpu_custom_call.1} parent=1 // loop_footer
      %s21 = sadd.s32 1, %s17
    $region7: #{tpu_custom_call.1} parent=1 // loop_footer_branch
      %16 = sbr.rel target = $region3
    $region8: #{tpu_custom_call.1} parent=1 // loop_exit
      _
    %585 = vsyncpa [#allocation4], 1
    %s586 = scalar_lea.sflag [#allocation4], 1
    %587 = vsyncpa %s586, 1
    %588 = vsyncpa [#allocation5], 1
    %s589 = scalar_lea.sflag [#allocation5], 1
    %590 = vsyncpa %s589, 1

</llo_original>
